<compile_context>
chip_gen: v6e
topology: v6e:2x2x1
jax: 0.10.0
libtpu: 0.0.40
codegen_flags: <defaults>
</compile_context>

<pallas_src>
import jax
import jax.numpy as jnp
from jax.experimental import pallas as pl
from jax.experimental.pallas import tpu as pltpu


def setup_2d(img_size: int, num_tokens: int):
    assert int(num_tokens ** 0.5) ** 2 == num_tokens, "num_patches must be a perfect square"
    img_size = (img_size, img_size)
    grid_size = (int(num_tokens ** 0.5), int(num_tokens ** 0.5))
    if grid_size[0] <= img_size[0]:
        assert grid_size[1] <= img_size[1]
        patch_size = ((img_size[0] - 1) // grid_size[0] + 1,
                      (img_size[1] - 1) // grid_size[1] + 1)
        pad_size = (patch_size[0] * grid_size[0] - img_size[0],
                    patch_size[1] * grid_size[1] - img_size[1])
    else:
        patch_size = (1, 1)
        pad_size = (grid_size[0] - img_size[0], grid_size[1] - img_size[1])
    return (img_size, grid_size, patch_size, pad_size)


def _round_up(x: int, m: int) -> int:
    return ((x + m - 1) // m) * m


def _proj_kernel(x_ref, w_ref, b_ref, o_ref):
    # (tm, Kp) bf16 @ (Kp, tn) bf16 -> f32 on the MXU; bias broadcast-add on VPU.
    acc = jnp.dot(x_ref[...], w_ref[...], preferred_element_type=jnp.float32)
    o_ref[...] = (acc + b_ref[...]).astype(o_ref.dtype)


def order2_conv_input_proj(x, conv_w, conv_b, *, img_size: int, num_tokens: int,
                           compute_dtype=jnp.bfloat16):
    """x: (B, H, W, C) channels-last.  conv_w: (E, C, ph, pw) (PyTorch OIHW).
    Returns (B, num_tokens, E)."""
    B, H, W, C = x.shape
    (ih, iw), (gh, gw), (ph, pw), (pad_h, pad_w) = setup_2d(img_size, num_tokens)
    assert H == ih, f"Input image height ({H}) doesn't match model ({ih})."
    assert W == iw, f"Input image width ({W}) doesn't match model ({iw})."
    E = conv_w.shape[0]
    out_dtype = x.dtype

    # Pad bottom/right of spatial dims (channels-last layout -> axes 1, 2).
    x = jnp.pad(x, ((0, 0), (0, pad_h), (0, pad_w), (0, 0)))

    # Non-overlapping patch extraction: (B, gh, ph, gw, pw, C) -> (M, K).
    # NOTE: for very large inputs this extra HBM pass could be fused into the
    # kernel (grid over (B, gh, a<ph), per-row (gw, pw*C) view + accumulate);
    # kept outside here since per-step M = B*gw would be tiny at these shapes.
    patches = (x.reshape(B, gh, ph, gw, pw, C)
                 .transpose(0, 1, 3, 2, 4, 5)
                 .reshape(B * gh * gw, ph * pw * C))

    # Conv weight (E, C, ph, pw) -> (ph, pw, C, E) -> (K, E) to match the
    # (a, b, c) flattening order of each patch row above.
    w_mat = jnp.transpose(conv_w, (2, 3, 1, 0)).reshape(ph * pw * C, E)

    M, K = patches.shape

    # --- lane/sublane-dense padding -------------------------------------
    Kp = _round_up(K, 128)          # lane-dense contraction
    Ep = _round_up(E, 128)          # lane-dense output (unmasked vst)

    # M tiling: multiple grid steps when M is big enough so the pipeline can
    # prefetch tile i+1 while computing tile i; tiles fit every generation's
    # scoped VMEM (v5e 16 MiB default, v7x 64 MiB physical).
    TM_TARGET = 256                 # multiple of 128 (MXU) and of 16 (bf16 packing)
    if M >= TM_TARGET:
        tm = TM_TARGET
        Mp = _round_up(M, tm)
    else:
        Mp = _round_up(M, 16)       # bf16 sublane packing
        tm = Mp

    # E tiling: keep weight/out tiles modest when embed_dim is large.
    if Ep <= 512:
        tn = Ep
    elif Ep % 256 == 0:
        tn = 256
    else:
        tn = 128

    patches = jnp.pad(patches, ((0, Mp - M), (0, Kp - K))).astype(compute_dtype)
    w_mat = jnp.pad(w_mat, ((0, Kp - K), (0, Ep - E))).astype(compute_dtype)
    b2 = jnp.pad(conv_b.astype(jnp.float32), (0, Ep - E)).reshape(1, Ep)

    grid = (Mp // tm, Ep // tn)
    bytes_in = (Mp * Kp + Kp * Ep) * patches.dtype.itemsize
    bytes_out = Mp * Ep * jnp.dtype(out_dtype).itemsize
    cost = pl.CostEstimate(flops=2 * Mp * Kp * Ep,
                           transcendentals=0,
                           bytes_accessed=bytes_in + Ep * 4 + bytes_out)

    out = pl.pallas_call(
        _proj_kernel,
        out_shape=jax.ShapeDtypeStruct((Mp, Ep), out_dtype),
        grid=grid,
        in_specs=[
            pl.BlockSpec((tm, Kp), lambda i, j: (i, 0)),
            pl.BlockSpec((Kp, tn), lambda i, j: (0, j)),
            pl.BlockSpec((1, tn), lambda i, j: (0, j)),
        ],
        out_specs=pl.BlockSpec((tm, tn), lambda i, j: (i, j)),
        compiler_params=pltpu.CompilerParams(
            dimension_semantics=("parallel", "parallel")),
        cost_estimate=cost,
    )(patches, w_mat, b2)

    # Strip padding only when it exists (avoid a gratuitous copy otherwise).
    if Mp != M or Ep != E:
        out = out[:M, :E]
    return out.reshape(B, gh * gw, E)


def _reference(x, conv_w, conv_b, *, img_size: int, num_tokens: int):
    """Pure-JAX reference replicating the PyTorch forward (NCHW conv)."""
    B, H, W, C = x.shape
    _, (gh, gw), (ph, pw), (pad_h, pad_w) = setup_2d(img_size, num_tokens)
    E = conv_w.shape[0]
    x_nchw = jnp.transpose(x, (0, 3, 1, 2))
    x_nchw = jnp.pad(x_nchw, ((0, 0), (0, 0), (0, pad_h), (0, pad_w)))
    y = jax.lax.conv_general_dilated(
        x_nchw, conv_w, window_strides=(ph, pw), padding="VALID",
        dimension_numbers=("NCHW", "OIHW", "NCHW"))
    y = y + conv_b[None, :, None, None]
    return y.reshape(B, E, gh * gw).transpose(0, 2, 1)


if __name__ == "__main__":
    # Small shapes consistent with the module:
    B, img_size, in_chans, num_tokens, embed_dim = 2, 16, 4, 16, 32
    _, _, (ph, pw), _ = setup_2d(img_size, num_tokens)  # -> patch (4, 4), pad (0, 0)

    key = jax.random.PRNGKey(0)
    kx, kw, kb = jax.random.split(key, 3)

    x = jax.random.normal(kx, (B, img_size, img_size, in_chans), dtype=jnp.float32)

    # Deterministic synthetic conv parameters (Conv2d(in_chans, embed_dim, (ph, pw))):
    fan_in = in_chans * ph * pw
    bound = 1.0 / (fan_in ** 0.5)
    conv_w = jax.random.uniform(kw, (embed_dim, in_chans, ph, pw),
                                minval=-bound, maxval=bound, dtype=jnp.float32)
    conv_b = jax.random.uniform(kb, (embed_dim,),
                                minval=-bound, maxval=bound, dtype=jnp.float32)

    out = order2_conv_input_proj(x, conv_w, conv_b,
                                 img_size=img_size, num_tokens=num_tokens)
    out = jax.block_until_ready(out)

    # Full-f32 reference: tolerance reflects bf16 operands with f32 accumulation.
    ref = _reference(x, conv_w, conv_b, img_size=img_size, num_tokens=num_tokens)
    assert out.shape == (B, num_tokens, embed_dim), out.shape
    assert jnp.allclose(out, ref, atol=3e-2, rtol=3e-2), "mismatch vs f32 reference"

    # Tight check against a reference whose operands were rounded to bf16
    # (products of bf16 values are exact in f32, so this isolates accumulation
    # order from the precision loss of the cast itself).
    ref_bf16 = _reference(x.astype(jnp.bfloat16).astype(jnp.float32),
                          conv_w.astype(jnp.bfloat16).astype(jnp.float32),
                          conv_b, img_size=img_size, num_tokens=num_tokens)
    assert jnp.allclose(out, ref_bf16, atol=1e-4, rtol=1e-4), "mismatch vs bf16 reference"

    print("KERNEL_OK")
</pallas_src>

<mosaic_0001>
module attributes {stable_mosaic.version = 11 : i64} {
  func.func @_proj_kernel(%arg0: i32, %arg1: i32, %arg2: memref<32x128xbf16, #tpu.memory_space<vmem>>, %arg3: memref<128x128xbf16, #tpu.memory_space<vmem>>, %arg4: memref<1x128xf32, #tpu.memory_space<vmem>>, %arg5: memref<32x128xf32, #tpu.memory_space<vmem>>) attributes {dimension_semantics = [#tpu.dimension_semantics<parallel>, #tpu.dimension_semantics<parallel>], iteration_bounds = array<i64: 1, 1>, scalar_prefetch = 0 : i64, scratch_operands = 0 : i64, tpu.core_type = #tpu.core_type<tc>, window_params = [{transform_indices = @transform_0, window_bounds = array<i64: 32, 128>}, {transform_indices = @transform_1, window_bounds = array<i64: 128, 128>}, {transform_indices = @transform_2, window_bounds = array<i64: 1, 128>}, {transform_indices = @transform_3, window_bounds = array<i64: 32, 128>}]} {
    %c0 = arith.constant 0 : index
    %c0_0 = arith.constant 0 : index
    %0 = vector.load %arg2[%c0, %c0_0] : memref<32x128xbf16, #tpu.memory_space<vmem>>, vector<32x128xbf16>
    %c0_1 = arith.constant 0 : index
    %c0_2 = arith.constant 0 : index
    %1 = vector.load %arg3[%c0_1, %c0_2] : memref<128x128xbf16, #tpu.memory_space<vmem>>, vector<128x128xbf16>
    %cst = arith.constant dense<0.000000e+00> : vector<32x128xf32>
    %2 = tpu.matmul %0, %1, %cst {dimension_numbers = #tpu.dot_dimension_numbers<[1], [0], [0], [1], [0, 0, 1, 1], [], []>} : vector<32x128xbf16>, vector<128x128xbf16>, vector<32x128xf32> -> vector<32x128xf32>
    %c0_3 = arith.constant 0 : index
    %c0_4 = arith.constant 0 : index
    %3 = vector.load %arg4[%c0_3, %c0_4] : memref<1x128xf32, #tpu.memory_space<vmem>>, vector<1x128xf32>
    %4 = vector.broadcast %3 : vector<1x128xf32> to vector<32x128xf32>
    %5 = arith.addf %2, %4 : vector<32x128xf32>
    %c0_5 = arith.constant 0 : index
    %c0_6 = arith.constant 0 : index
    %6 = vector.load %arg5[%c0_5, %c0_6] : memref<32x128xf32, #tpu.memory_space<vmem>>, vector<32x128xf32>
    tpu.vector_store %arg5[%c0_5, %c0_6], %5 {strides = array<i32>} : memref<32x128xf32, #tpu.memory_space<vmem>>, vector<32x128xf32>,
    return
  }
  func.func @transform_0(%arg0: i32, %arg1: i32) -> (i32, i32) {
    %c0_i32 = arith.constant 0 : i32
    %c0_i32_0 = arith.constant 0 : i32
    return %arg0, %c0_i32 : i32, i32
  }
  func.func @transform_1(%arg0: i32, %arg1: i32) -> (i32, i32) {
    %c0_i32 = arith.constant 0 : i32
    %c0_i32_0 = arith.constant 0 : i32
    return %c0_i32, %arg1 : i32, i32
  }
  func.func @transform_2(%arg0: i32, %arg1: i32) -> (i32, i32) {
    %c0_i32 = arith.constant 0 : i32
    %c0_i32_0 = arith.constant 0 : i32
    return %c0_i32, %arg1 : i32, i32
  }
  func.func @transform_3(%arg0: i32, %arg1: i32) -> (i32, i32) {
    %c0_i32 = arith.constant 0 : i32
    return %arg0, %arg1 : i32, i32
  }
}

</mosaic_0001>

<llo_original>
// kernel: tpu_custom_call.1
$region0: #{tpu_custom_call.1}
  #allocation0 [shape = 'u32[]', space=smem, size = 0x4, offset = 0x4, fixed_abs, tag = 'smem constant byte address 0x4 - core index']
  #allocation1 [shape = 'u32[144,128]{1,0:T(1,128)}', space=vmem, size = 0x12000, scoped, tag = 'internal scratch']
  %s0 = inlined_call_operand.hbm [shape: bf16[32,128], index: 0, kind: input, shape index: {}]
  %s1 = inlined_call_operand.hbm [shape: bf16[128,128], index: 1, kind: input, shape index: {}]
  %s2 = inlined_call_operand.vmem [shape: f32[1,128], index: 2, kind: input, shape index: {}]
  %s3 = inlined_call_operand.hbm [shape: f32[32,128], index: 3, kind: output, shape index: {}]
  %s4 = sld [smem:[#allocation0]]
  $region30: #{tpu_custom_call.1} parent=0
    _
  %s6 = ssub.s32 1, %s4
  %s7 = scalar_select 0, %s6, %s4
  $region1: #{tpu_custom_call.1} parent=0
    #allocation2 [shape = 'u8[8192]{0}', space=vmem, size = 0x2000, scoped, tag = 'input window, operand 0, single buffered']
    #allocation3 [shape = 's32[1]{0}', space=sflag, size = 0x4, scoped, tag = 'scoped memory for tpu_custom_call.1']
    #allocation4 [shape = 's32[1]{0}', space=sflag, size = 0x4, scoped, tag = 'scoped memory for tpu_custom_call.1']
    #allocation5 [shape = 'u8[32768]{0}', space=vmem, size = 0x8000, scoped, tag = 'input window, operand 1, single buffered']
    #allocation6 [shape = 's32[1]{0}', space=sflag, size = 0x4, scoped, tag = 'scoped memory for tpu_custom_call.1']
    #allocation7 [shape = 'u8[16384]{0}', space=vmem, size = 0x4000, scoped, tag = 'output window, operand 0, single buffered']
    %8 = vsyncpa [#allocation3], 0
    %9 = vsyncpa [#allocation6], 0
    %10 = vsyncpa [#allocation4], 0
    // Predicated region
    $region2: #{tpu_custom_call.1} parent=1 // pred_check
      _
    $region3: #{tpu_custom_call.1} parent=1 // pred_check_branch
      %12 = sbr.rel (0) target = $region5
    $region4: #{tpu_custom_call.1} parent=1 // pred_region
      %s14 = ssub.s32 256, 256
      %15 = vsyncadd [#allocation3], %s14
      %s16 = sshll.u32 [#allocation2], 4
      %s17 = int_to_ptr.vmem [resolvable:$true] %s16
      %22 = dma.hbm_to_vmem [thread:$0]  %s0, 256, %s17, [#allocation3], 64, 64, 4
    $region5: #{tpu_custom_call.1} parent=1 // pred_fallthru
      _
    // Predicated region
    $region6: #{tpu_custom_call.1} parent=1 // pred_check
      _
    $region7: #{tpu_custom_call.1} parent=1 // pred_check_branch
      %24 = sbr.rel (0) target = $region9
    $region8: #{tpu_custom_call.1} parent=1 // pred_region
      %s26 = ssub.s32 1024, 1024
      %27 = vsyncadd [#allocation6], %s26
      %s28 = sshll.u32 [#allocation5], 4
      %s29 = int_to_ptr.vmem [resolvable:$true] %s28
      %34 = dma.hbm_to_vmem [thread:$0]  %s1, 1024, %s29, [#allocation6], 64, 64, 4
    $region9: #{tpu_custom_call.1} parent=1 // pred_fallthru
      _
    // Predicated region
    $region10: #{tpu_custom_call.1} parent=1 // pred_check
      _
    $region11: #{tpu_custom_call.1} parent=1 // pred_check_branch
      %36 = sbr.rel (0) target = $region13
    $region12: #{tpu_custom_call.1} parent=1 // pred_region
      _
    $region13: #{tpu_custom_call.1} parent=1 // pred_fallthru
      _
    // Predicated region
    $region14: #{tpu_custom_call.1} parent=1 // pred_check
      _
    $region15: #{tpu_custom_call.1} parent=1 // pred_check_branch
      %38 = sbr.rel (0) target = $region17
    $region16: #{tpu_custom_call.1} parent=1 // pred_region
      %39 = dma.done [#allocation3], 256
    $region17: #{tpu_custom_call.1} parent=1 // pred_fallthru
      _
    // Predicated region
    $region18: #{tpu_custom_call.1} parent=1 // pred_check
      _
    $region19: #{tpu_custom_call.1} parent=1 // pred_check_branch
      %41 = sbr.rel (0) target = $region21
    $region20: #{tpu_custom_call.1} parent=1 // pred_region
      %42 = dma.done [#allocation6], 1024
    $region21: #{tpu_custom_call.1} parent=1 // pred_fallthru
      _
    %v44 = vld [vmem:[#allocation2] sm:$0xf]
    %v45 = vld [vmem:[#allocation2 + $0x4] sm:$0xf]
    %v46 = vld [vmem:[#allocation2 + $0x8] sm:$0xf]
    %v47 = vld [vmem:[#allocation2 + $0xc] sm:$0xf]
    %v48 = vld [vmem:[#allocation5] sm:$0xf]
    %v49 = vld [vmem:[#allocation5 + $0x4] sm:$0xf]
    %v50 = vld [vmem:[#allocation5 + $0x8] sm:$0xf]
    %v51 = vld [vmem:[#allocation5 + $0xc] sm:$0xf]
    %v52 = vld [vmem:[#allocation5 + $0x10] sm:$0xf]
    %v53 = vld [vmem:[#allocation5 + $0x14] sm:$0xf]
    %v54 = vld [vmem:[#allocation5 + $0x18] sm:$0xf]
    %v55 = vld [vmem:[#allocation5 + $0x1c] sm:$0xf]
    %v56 = vld [vmem:[#allocation5 + $0x20] sm:$0xf]
    %v57 = vld [vmem:[#allocation5 + $0x24] sm:$0xf]
    %v58 = vld [vmem:[#allocation5 + $0x28] sm:$0xf]
    %v59 = vld [vmem:[#allocation5 + $0x2c] sm:$0xf]
    %v60 = vld [vmem:[#allocation5 + $0x30] sm:$0xf]
    %v61 = vld [vmem:[#allocation5 + $0x34] sm:$0xf]
    %v62 = vld [vmem:[#allocation5 + $0x38] sm:$0xf]
    %v63 = vld [vmem:[#allocation5 + $0x3c] sm:$0xf]
    %v64 = vld [vmem:[%s2] sm:$0x1]
    %v66 = vlaneseq
    %v67 = vshrl.u32 %v66, 7
    %v68 = vsub.s32 0, %v67
    %v69 = vrot.slane %v64, %v68
    %v75 = vunpack.c.l.b16 %v44
    %v76 = vunpack.c.l.b16 %v45
    %v77 = vunpack.c.l.b16 %v46
    %v78 = vunpack.c.l.b16 %v47
    %v79 = vpack.c.b16 %v76, %v75
    %v80 = vpack.c.b16 %v78, %v77
    %v99 = vunpack.c.l.b16 %v48
    %v100 = vunpack.c.l.b16 %v49
    %v101 = vunpack.c.l.b16 %v50
    %v102 = vunpack.c.l.b16 %v51
    %v103 = vunpack.c.l.b16 %v52
    %v104 = vunpack.c.l.b16 %v53
    %v105 = vunpack.c.l.b16 %v54
    %v106 = vunpack.c.l.b16 %v55
    %v107 = vunpack.c.l.b16 %v56
    %v108 = vunpack.c.l.b16 %v57
    %v109 = vunpack.c.l.b16 %v58
    %v110 = vunpack.c.l.b16 %v59
    %v111 = vunpack.c.l.b16 %v60
    %v112 = vunpack.c.l.b16 %v61
    %v113 = vunpack.c.l.b16 %v62
    %v114 = vunpack.c.l.b16 %v63
    %v115 = vpack.c.b16 %v100, %v99
    %v116 = vpack.c.b16 %v102, %v101
    %v117 = vpack.c.b16 %v104, %v103
    %v118 = vpack.c.b16 %v106, %v105
    %v119 = vpack.c.b16 %v108, %v107
    %v120 = vpack.c.b16 %v110, %v109
    %v121 = vpack.c.b16 %v112, %v111
    %v122 = vpack.c.b16 %v114, %v113
    %131 = vmatprep.subr.bf16.mxu0 0
    %132 = vmatpush1.bf16.msra.mxu0 %v122
    %133 = vmatprep.subr.bf16.mxu0 0
    %134 = vmatpush1.bf16.msra.mxu0 %v121
    %135 = vmatprep.subr.bf16.mxu0 0
    %136 = vmatpush1.bf16.msra.mxu0 %v120
    %137 = vmatprep.subr.bf16.mxu0 0
    %138 = vmatpush1.bf16.msra.mxu0 %v119
    %139 = vmatprep.subr.bf16.mxu0 0
    %140 = vmatpush1.bf16.msra.mxu0 %v118
    %141 = vmatprep.subr.bf16.mxu0 0
    %142 = vmatpush1.bf16.msra.mxu0 %v117
    %143 = vmatprep.subr.bf16.mxu0 0
    %144 = vmatpush1.bf16.msra.mxu0 %v116
    %145 = vmatprep.subr.bf16.mxu0 0
    %146 = vmatpush1.bf16.msra.mxu0 %v115
    %147 = vmatprep.subr.bf16.mxu0 0
    %148 = vmatpush2.bf16.msra.mxu0 0
    %149 = vmatprep.subr.bf16.mxu0 0
    %150 = vmatpush2.bf16.msra.mxu0 0
    %151 = vmatprep.subr.bf16.mxu0 0
    %152 = vmatpush2.bf16.msra.mxu0 0
    %153 = vmatprep.subr.bf16.mxu0 0
    %154 = vmatpush2.bf16.msra.mxu0 0
    %155 = vmatprep.subr.bf16.mxu0 0
    %156 = vmatpush2.bf16.msra.mxu0 0
    %157 = vmatprep.subr.bf16.mxu0 0
    %158 = vmatpush2.bf16.msra.mxu0 0
    %159 = vmatprep.subr.bf16.mxu0 0
    %160 = vmatpush2.bf16.msra.mxu0 0
    %161 = vmatprep.subr.bf16.mxu0 0
    %162 = vmatpush2.bf16.msra.mxu0 0
    %163 = vmatprep.mubr.bf16.mxu0 0
    %164 = vmatmul.mubr.bf16.gmra.mxu0 %v79
    %v165 = vpop.f32.mrf.mxu0
    %v166 = vadd.f32 %v69, %v165
    %v167 = vpop.f32.mrf.mxu0
    %v168 = vpop.f32.mrf.mxu0
    %v169 = vadd.f32 %v69, %v168
    %v170 = vpop.f32.mrf.mxu0
    %171 = vmatprep.mubr.bf16.mxu0 0
    %172 = vmatmul.mubr.bf16.gmra.mxu0 %v80
    %v173 = vpop.f32.mrf.mxu0
    %v174 = vadd.f32 %v69, %v173
    %v175 = vpop.f32.mrf.mxu0
    %v176 = vpop.f32.mrf.mxu0
    %v177 = vadd.f32 %v69, %v176
    %v178 = vpop.f32.mrf.mxu0
    %179 = vdwg.mxu0
    %180 = vst [vmem:[#allocation7] sm:$0xff] %v166
    %181 = vst [vmem:[#allocation7 + $0x8] sm:$0xff] %v169
    %182 = vst [vmem:[#allocation7 + $0x10] sm:$0xff] %v174
    %183 = vst [vmem:[#allocation7 + $0x18] sm:$0xff] %v177
    // Predicated region
    $region22: #{tpu_custom_call.1} parent=1 // pred_check
      _
    $region23: #{tpu_custom_call.1} parent=1 // pred_check_branch
      %185 = sbr.rel (0) target = $region25
    $region24: #{tpu_custom_call.1} parent=1 // pred_region
      %s187 = ssub.s32 512, 512
      %188 = vsyncadd [#allocation4], %s187
      %s189 = sshll.u32 [#allocation7], 4
      %s190 = int_to_ptr.vmem [resolvable:$true] %s189
      %195 = dma.vmem_to_hbm [thread:$0]  %s190, 512, %s3, [#allocation4], 128, 128, 8
    $region25: #{tpu_custom_call.1} parent=1 // pred_fallthru
      _
    // Predicated region
    $region26: #{tpu_custom_call.1} parent=1 // pred_check
      _
    $region27: #{tpu_custom_call.1} parent=1 // pred_check_branch
      %197 = sbr.rel (0) target = $region29
    $region28: #{tpu_custom_call.1} parent=1 // pred_region
      %198 = dma.done [#allocation4], 512
    $region29: #{tpu_custom_call.1} parent=1 // pred_fallthru
      _
    %199 = vsyncpa [#allocation3], 1
    %200 = vsyncpa [#allocation6], 1
    %201 = vsyncpa [#allocation4], 1

</llo_original>
